<compile_context>
chip_gen: v7x
topology: tpu7x:2x2x1
jax: 0.10.0
libtpu: 0.0.40
codegen_flags: <defaults>
</compile_context>

<pallas_src>
import functools

import jax
import jax.numpy as jnp
import numpy as np
from jax import lax
from jax.experimental import pallas as pl
from jax.experimental.pallas import tpu as pltpu

_TB = 128  # task (lane) block width


def _metrics_kernel(n_ref, out_ref, prob_ref, tar_ref, o_ref,
                    neg_ref, acc_ref, *, rb, nb):
    """One grid step handles a [Np, _TB] slab of (out, prob, tar).

    Writes an [8, _TB] slab: rows (acc, pre, rec, f1, auc, auc_valid, 0, 0).
    Pairwise (Mann-Whitney) work is tiled in rb x rb row blocks and only the
    lower triangle of block pairs is computed (symmetry: S(k,j) = 2 - S(j,k)).
    """
    n = n_ref[0]  # true (unpadded) number of rows

    # acc_ref rows: 0 = tp, 1 = sum(out), 2 = sum(pos), 3 = raw auc numerator
    acc_ref[...] = jnp.zeros_like(acc_ref)

    # ---- Phase 0: masked negatives, once per grid step (O(nb)) ------------
    @pl.loop(0, nb)
    def _neg_init(b):
        start = pl.multiple_of(b * rb, rb)
        rid = lax.broadcasted_iota(jnp.int32, (rb, _TB), 0) + start
        m = (rid < n).astype(jnp.float32)
        neg_ref[pl.ds(start, rb), :] = (1.0 - tar_ref[pl.ds(start, rb), :]) * m

    def load(ref, b):
        start = pl.multiple_of(b * rb, rb)
        return ref[pl.ds(start, rb), :]

    # ---- Phase 1: confusion matrix + symmetric pairwise AUC ---------------
    @pl.loop(0, nb)
    def _j_loop(jb):
        prob_j = load(prob_ref, jb)
        pos_j = load(tar_ref, jb)      # tar is already 0 on padded rows
        neg_j = load(neg_ref, jb)      # (1 - tar) * row_mask
        out_j = load(out_ref, jb)      # out is already 0 on padded rows

        # Confusion-matrix partial sums: 3 reductions (fp/fn/tn derived later).
        acc_ref[0:1, :] = acc_ref[0:1, :] + jnp.sum(pos_j * out_j, axis=0,
                                                    keepdims=True)
        acc_ref[1:2, :] = acc_ref[1:2, :] + jnp.sum(out_j, axis=0,
                                                    keepdims=True)
        acc_ref[2:3, :] = acc_ref[2:3, :] + jnp.sum(pos_j, axis=0,
                                                    keepdims=True)

        nneg_j = jnp.sum(neg_j, axis=0, keepdims=True)   # [1, _TB]

        # Broadcast views hoisted out of the inner block-pair loop.
        pj = prob_j[:, None, :]                          # [rb, 1, _TB]
        pos_jb = pos_j[:, None, :]
        neg_jb = neg_j[:, None, :]

        # Diagonal block (kb == jb): one compare tile covers all intra-block
        # ordered pairs (the j == k diagonal is killed by pos*neg == 0).
        pk_d = prob_j[None, :, :]
        s2_d = ((pj > pk_d).astype(jnp.float32)
                + (pj >= pk_d).astype(jnp.float32))      # = 2*gt + eq
        a_d = jnp.sum(pos_jb * s2_d, axis=0)             # [rb, _TB]
        acc_ref[3:4, :] = acc_ref[3:4, :] + jnp.sum(neg_j * a_d, axis=0,
                                                    keepdims=True)

        # Off-diagonal block pairs (kb < jb): compare tile computed once,
        # reverse direction recovered via S(k, j) = 2 - S(j, k):
        #   forward  = sum_k neg_k * (sum_j pos_j * S)
        #   backward = 2 * Nneg_jb * Npos_kb - sum_k pos_k * (sum_j neg_j * S)
        @pl.loop(0, jb)
        def _k_loop(kb):
            prob_k = load(prob_ref, kb)
            pos_k = load(tar_ref, kb)
            neg_k = load(neg_ref, kb)
            pk = prob_k[None, :, :]
            s2 = ((pj > pk).astype(jnp.float32)
                  + (pj >= pk).astype(jnp.float32))      # [rb, rb, _TB]
            a_k = jnp.sum(pos_jb * s2, axis=0)           # sum_j pos_j*S(j,k)
            b_k = jnp.sum(neg_jb * s2, axis=0)           # sum_j neg_j*S(j,k)
            npos_k = jnp.sum(pos_k, axis=0, keepdims=True)
            contrib = (jnp.sum(neg_k * a_k - pos_k * b_k, axis=0,
                               keepdims=True)
                       + 2.0 * nneg_j * npos_k)
            acc_ref[3:4, :] = acc_ref[3:4, :] + contrib

    # ---- Finalize ----------------------------------------------------------
    tp = acc_ref[0:1, :]
    s_out = acc_ref[1:2, :]
    s_pos = acc_ref[2:3, :]
    auc_num = 0.5 * acc_ref[3:4, :]        # hoisted tie weight

    cnt = n.astype(jnp.float32)
    fp = s_out - tp
    fn = s_pos - tp
    tn = cnt - s_out - s_pos + tp

    def safe_div(a, b):
        # sklearn zero_division behaviour: return 0 when denominator is 0.
        return jnp.where(b > 0, a / jnp.where(b > 0, b, 1.0), 0.0)

    acc = safe_div(tp + tn, cnt)
    pre = safe_div(tp, tp + fp)
    rec = safe_div(tp, s_pos)
    f1 = safe_div(2.0 * tp, 2.0 * tp + fp + fn)

    n_pos = s_pos
    n_neg = cnt - s_pos
    auc_den = n_pos * n_neg
    auc = safe_div(auc_num, auc_den)
    # Emulates the `try/except` around self.auc_f: ROC-AUC only defined when
    # both classes are present in the column.
    auc_valid = (auc_den > 0).astype(jnp.float32)

    # Direct lane-dense row writes (no concatenate temporary).
    o_ref[0:1, :] = acc
    o_ref[1:2, :] = pre
    o_ref[2:3, :] = rec
    o_ref[3:4, :] = f1
    o_ref[4:5, :] = auc
    o_ref[5:6, :] = auc_valid
    o_ref[6:8, :] = jnp.zeros((2, _TB), jnp.float32)


def metrics_c_forward(out, prob, tar):
    """Returns (acc, f1, pre, rec, auc), matching metrics_c.forward ordering."""
    out = jnp.asarray(out, jnp.float32)
    prob = jnp.asarray(prob, jnp.float32)
    tar = jnp.asarray(tar, jnp.float32)

    single = (out.ndim == 1)
    if single:
        out, prob, tar = out[:, None], prob[:, None], tar[:, None]

    N, T = out.shape
    # Row block for the tiled pairwise AUC (multiple of 8 sublanes);
    # Np is padded to a multiple of rb so in-kernel pl.ds slices are exact.
    rb = min(64, ((N + 7) // 8) * 8)
    Np = ((N + rb - 1) // rb) * rb
    nb = Np // rb
    Tp = ((T + _TB - 1) // _TB) * _TB

    def pad(x):
        return jnp.pad(x, ((0, Np - N), (0, Tp - T)))

    outp, probp, tarp = pad(out), pad(prob), pad(tar)
    n_rows = jnp.array([N], jnp.int32)  # scalar-prefetch: true row count

    kernel = functools.partial(_metrics_kernel, rb=rb, nb=nb)

    # Input pipelining: the kernel is compute-bound (O(N^2) compares vs O(N)
    # bytes), so for very large Np drop to single-buffered inputs to keep the
    # full-column slabs inside v7x's 64 MiB VMEM.
    large_np = (6 * Np * _TB * 4) > (24 << 20)   # double-buffered inputs > 24 MiB
    buffers = 1 if large_np else 2
    spec_kwargs = {"pipeline_mode": pl.Buffered(1)} if large_np else {}
    in_spec = pl.BlockSpec((Np, _TB), lambda i, n: (0, i), **spec_kwargs)

    # VMEM budget: pipelined inputs + neg scratch + inner compare-tile
    # temporaries + headroom; never claim the full 64 MiB of a v7x core.
    vmem_need = (3 * buffers * Np * _TB * 4      # pipelined input slabs
                 + Np * _TB * 4                  # neg scratch
                 + (8 << 20)                     # [rb, rb, 128] temporaries
                 + (4 << 20))                    # headroom
    vmem_limit = int(min(max(vmem_need, 16 << 20), 48 << 20))

    res = pl.pallas_call(
        kernel,
        out_shape=jax.ShapeDtypeStruct((8, Tp), jnp.float32),
        grid_spec=pltpu.PrefetchScalarGridSpec(
            num_scalar_prefetch=1,
            grid=(Tp // _TB,),
            in_specs=[in_spec] * 3,
            out_specs=pl.BlockSpec((8, _TB), lambda i, n: (0, i)),
            scratch_shapes=[
                pltpu.VMEM((Np, _TB), jnp.float32),   # masked negatives
                pltpu.VMEM((8, _TB), jnp.float32),    # accumulators
            ],
        ),
        compiler_params=pltpu.CompilerParams(
            dimension_semantics=("parallel",),
            vmem_limit_bytes=vmem_limit,
        ),
    )(n_rows, outp, probp, tarp)

    res = res[:, :T]
    acc, pre, rec, f1, auc, auc_valid = (res[0], res[1], res[2],
                                         res[3], res[4], res[5])

    if single:
        # Original sklearn path raises when only one class is present; we
        # cannot raise from traced code, so surface NaN instead of a silent 0.
        auc0 = jnp.where(auc_valid[0] > 0, auc[0], jnp.nan)
        return (acc[0], f1[0], pre[0], rec[0], auc0)

    # Multi-task branch: averages across tasks; AUC averaged only over tasks
    # where it was computable (mirrors the try/except + np.mean(auc) logic).
    n_valid = jnp.sum(auc_valid)
    auc_mean = jnp.where(n_valid > 0,
                         jnp.sum(auc * auc_valid) / jnp.maximum(n_valid, 1.0),
                         jnp.nan)  # np.mean([]) -> nan
    return (jnp.mean(acc), jnp.mean(f1), jnp.mean(pre), jnp.mean(rec), auc_mean)


def _np_reference(out, prob, tar):
    """Plain-numpy replica of sklearn binary metrics, for verification."""
    accs, f1s, pres, recs, aucs = [], [], [], [], []
    for i in range(out.shape[1]):
        o, p, t = out[:, i], prob[:, i], tar[:, i]
        tp = float(np.sum((t == 1) & (o == 1)))
        fp = float(np.sum((t == 0) & (o == 1)))
        fn = float(np.sum((t == 1) & (o == 0)))
        tn = float(np.sum((t == 0) & (o == 0)))
        accs.append((tp + tn) / len(o))
        pres.append(tp / (tp + fp) if tp + fp > 0 else 0.0)
        recs.append(tp / (tp + fn) if tp + fn > 0 else 0.0)
        f1s.append(2 * tp / (2 * tp + fp + fn) if 2 * tp + fp + fn > 0 else 0.0)
        npos, nneg = np.sum(t == 1), np.sum(t == 0)
        if npos > 0 and nneg > 0:
            num = 0.0
            for j in range(len(p)):
                for k in range(len(p)):
                    if t[j] == 1 and t[k] == 0:
                        num += 1.0 if p[j] > p[k] else (0.5 if p[j] == p[k] else 0.0)
            aucs.append(num / (npos * nneg))
    return (np.mean(accs), np.mean(f1s), np.mean(pres), np.mean(recs),
            np.mean(aucs) if aucs else np.nan)


if __name__ == "__main__":
    # metrics_c.__init__ takes metric callables (no learnable parameters),
    # so there are no weights to initialize.
    key = jax.random.PRNGKey(0)
    k1, k2 = jax.random.split(key)
    N, T = 16, 3
    prob = jax.random.uniform(k1, (N, T), dtype=jnp.float32)
    tar = jax.random.bernoulli(k2, 0.5, (N, T)).astype(jnp.float32)
    out = (prob > 0.5).astype(jnp.float32)

    result = jax.block_until_ready(metrics_c_forward(out, prob, tar))
    ref = _np_reference(np.asarray(out), np.asarray(prob), np.asarray(tar))
    np.testing.assert_allclose(np.asarray([float(r) for r in result]),
                               np.asarray(ref), rtol=1e-5, atol=1e-6)

    # 1-D (single-task) branch as well.
    res1d = jax.block_until_ready(
        metrics_c_forward(out[:, 0], prob[:, 0], tar[:, 0]))
    ref1d = _np_reference(np.asarray(out[:, :1]), np.asarray(prob[:, :1]),
                          np.asarray(tar[:, :1]))
    np.testing.assert_allclose(np.asarray([float(r) for r in res1d]),
                               np.asarray(ref1d), rtol=1e-5, atol=1e-6)

    # Exercise multi-row-block / multi-task-block shapes to cover the
    # symmetric (triangular) pairwise loop and the lane-parallel grid
    # (N > rb so several off-diagonal block pairs, T > 128).
    k3, k4 = jax.random.split(k2)
    N2, T2 = 200, 150
    prob2 = jax.random.uniform(k3, (N2, T2), dtype=jnp.float32)
    tar2 = jax.random.bernoulli(k4, 0.5, (N2, T2)).astype(jnp.float32)
    out2 = (prob2 > 0.5).astype(jnp.float32)
    res2 = jax.block_until_ready(metrics_c_forward(out2, prob2, tar2))
    ref2 = _np_reference(np.asarray(out2), np.asarray(prob2), np.asarray(tar2))
    np.testing.assert_allclose(np.asarray([float(r) for r in res2]),
                               np.asarray(ref2), rtol=1e-5, atol=1e-6)

    print("KERNEL_OK")
</pallas_src>

<mosaic_0001>
module attributes {stable_mosaic.version = 11 : i64} {
  func.func @_metrics_kernel(%arg0: i32, %arg1: memref<1xi32, #tpu.memory_space<smem>>, %arg2: memref<16x128xf32, #tpu.memory_space<vmem>>, %arg3: memref<16x128xf32, #tpu.memory_space<vmem>>, %arg4: memref<16x128xf32, #tpu.memory_space<vmem>>, %arg5: memref<8x128xf32, #tpu.memory_space<vmem>>, %arg6: memref<16x128xf32, #tpu.memory_space<vmem>>, %arg7: memref<8x128xf32, #tpu.memory_space<vmem>>) attributes {dimension_semantics = [#tpu.dimension_semantics<parallel>], iteration_bounds = array<i64: 1>, scalar_prefetch = 1 : i64, scratch_operands = 2 : i64, tpu.core_type = #tpu.core_type<tc>, window_params = [{transform_indices = @transform_0, window_bounds = array<i64: 16, 128>}, {transform_indices = @transform_1, window_bounds = array<i64: 16, 128>}, {transform_indices = @transform_2, window_bounds = array<i64: 16, 128>}, {transform_indices = @transform_3, window_bounds = array<i64: 8, 128>}]} {
    %c0 = arith.constant 0 : index
    %0 = memref.load %arg1[%c0] : memref<1xi32, #tpu.memory_space<smem>>
    %cst = arith.constant 0.000000e+00 : f32
    %1 = vector.broadcast %cst : f32 to vector<8x128xf32>
    %c0_0 = arith.constant 0 : index
    %c0_1 = arith.constant 0 : index
    %2 = vector.load %arg7[%c0_0, %c0_1] : memref<8x128xf32, #tpu.memory_space<vmem>>, vector<8x128xf32>
    tpu.vector_store %arg7[%c0_0, %c0_1], %1 {strides = array<i32>} : memref<8x128xf32, #tpu.memory_space<vmem>>, vector<8x128xf32>,
    %c0_i32 = arith.constant 0 : i32
    %c1_i32 = arith.constant 1 : i32
    %3 = arith.muli %c0_i32, %c1_i32 : i32
    %c0_i32_2 = arith.constant 0 : i32
    %4 = arith.addi %c0_i32_2, %3 : i32
    %c16_i32 = arith.constant 16 : i32
    %5 = arith.muli %4, %c16_i32 : i32
    %6 = tpu.assume_multiple %5, 16 : i32
    %7 = tpu.iota {dimensions = array<i32: 0>} : vector<16x128xi32>
    %8 = vector.broadcast %6 : i32 to vector<16x128xi32>
    %9 = arith.addi %7, %8 : vector<16x128xi32>
    %10 = vector.broadcast %0 : i32 to vector<16x128xi32>
    %11 = arith.cmpi slt, %9, %10 : vector<16x128xi32>
    %12 = arith.extui %11 : vector<16x128xi1> to vector<16x128xi32>
    %13 = arith.sitofp %12 : vector<16x128xi32> to vector<16x128xf32>
    %14 = arith.index_cast %6 : i32 to index
    %c0_3 = arith.constant 0 : index
    %15 = vector.load %arg4[%14, %c0_3] : memref<16x128xf32, #tpu.memory_space<vmem>>, vector<16x128xf32>
    %cst_4 = arith.constant 1.000000e+00 : f32
    %16 = vector.broadcast %cst_4 : f32 to vector<16x128xf32>
    %17 = arith.subf %16, %15 : vector<16x128xf32>
    %18 = arith.mulf %17, %13 : vector<16x128xf32>
    %19 = arith.index_cast %6 : i32 to index
    %c0_5 = arith.constant 0 : index
    %20 = vector.load %arg6[%19, %c0_5] : memref<16x128xf32, #tpu.memory_space<vmem>>, vector<16x128xf32>
    tpu.vector_store %arg6[%19, %c0_5], %18 {strides = array<i32>} : memref<16x128xf32, #tpu.memory_space<vmem>>, vector<16x128xf32>,
    %c1_i32_6 = arith.constant 1 : i32
    %c0_i32_7 = arith.constant 0 : i32
    %c1_i32_8 = arith.constant 1 : i32
    %21 = arith.muli %c0_i32_7, %c1_i32_8 : i32
    %c0_i32_9 = arith.constant 0 : i32
    %22 = arith.addi %c0_i32_9, %21 : i32
    %c16_i32_10 = arith.constant 16 : i32
    %23 = arith.muli %22, %c16_i32_10 : i32
    %24 = tpu.assume_multiple %23, 16 : i32
    %25 = arith.index_cast %24 : i32 to index
    %c0_11 = arith.constant 0 : index
    %26 = vector.load %arg3[%25, %c0_11] : memref<16x128xf32, #tpu.memory_space<vmem>>, vector<16x128xf32>
    %c16_i32_12 = arith.constant 16 : i32
    %27 = arith.muli %22, %c16_i32_12 : i32
    %28 = tpu.assume_multiple %27, 16 : i32
    %29 = arith.index_cast %28 : i32 to index
    %c0_13 = arith.constant 0 : index
    %30 = vector.load %arg4[%29, %c0_13] : memref<16x128xf32, #tpu.memory_space<vmem>>, vector<16x128xf32>
    %c16_i32_14 = arith.constant 16 : i32
    %31 = arith.muli %22, %c16_i32_14 : i32
    %32 = tpu.assume_multiple %31, 16 : i32
    %33 = arith.index_cast %32 : i32 to index
    %c0_15 = arith.constant 0 : index
    %34 = vector.load %arg6[%33, %c0_15] : memref<16x128xf32, #tpu.memory_space<vmem>>, vector<16x128xf32>
    %c16_i32_16 = arith.constant 16 : i32
    %35 = arith.muli %22, %c16_i32_16 : i32
    %36 = tpu.assume_multiple %35, 16 : i32
    %37 = arith.index_cast %36 : i32 to index
    %c0_17 = arith.constant 0 : index
    %38 = vector.load %arg2[%37, %c0_17] : memref<16x128xf32, #tpu.memory_space<vmem>>, vector<16x128xf32>
    %c0_18 = arith.constant 0 : index
    %c0_19 = arith.constant 0 : index
    %39 = vector.load %arg7[%c0_18, %c0_19] : memref<8x128xf32, #tpu.memory_space<vmem>>, vector<1x128xf32>
    %40 = arith.mulf %30, %38 : vector<16x128xf32>
    %cst_20 = arith.constant dense<0.000000e+00> : vector<128xf32>
    %41 = vector.multi_reduction <add>, %40, %cst_20 [0] : vector<16x128xf32> to vector<128xf32>
    %42 = vector.shape_cast %41 : vector<128xf32> to vector<1x128xf32>
    %43 = arith.addf %39, %42 : vector<1x128xf32>
    %c0_21 = arith.constant 0 : index
    %c0_22 = arith.constant 0 : index
    %44 = vector.load %arg7[%c0_21, %c0_22] : memref<8x128xf32, #tpu.memory_space<vmem>>, vector<1x128xf32>
    tpu.vector_store %arg7[%c0_21, %c0_22], %43 {strides = array<i32>} : memref<8x128xf32, #tpu.memory_space<vmem>>, vector<1x128xf32>,
    %c1 = arith.constant 1 : index
    %c0_23 = arith.constant 0 : index
    %45 = vector.load %arg7[%c1, %c0_23] : memref<8x128xf32, #tpu.memory_space<vmem>>, vector<1x128xf32>
    %cst_24 = arith.constant dense<0.000000e+00> : vector<128xf32>
    %46 = vector.multi_reduction <add>, %38, %cst_24 [0] : vector<16x128xf32> to vector<128xf32>
    %47 = vector.shape_cast %46 : vector<128xf32> to vector<1x128xf32>
    %48 = arith.addf %45, %47 : vector<1x128xf32>
    %c1_25 = arith.constant 1 : index
    %c0_26 = arith.constant 0 : index
    %49 = vector.load %arg7[%c1_25, %c0_26] : memref<8x128xf32, #tpu.memory_space<vmem>>, vector<1x128xf32>
    tpu.vector_store %arg7[%c1_25, %c0_26], %48 {strides = array<i32>} : memref<8x128xf32, #tpu.memory_space<vmem>>, vector<1x128xf32>,
    %c2 = arith.constant 2 : index
    %c0_27 = arith.constant 0 : index
    %50 = vector.load %arg7[%c2, %c0_27] : memref<8x128xf32, #tpu.memory_space<vmem>>, vector<1x128xf32>
    %cst_28 = arith.constant dense<0.000000e+00> : vector<128xf32>
    %51 = vector.multi_reduction <add>, %30, %cst_28 [0] : vector<16x128xf32> to vector<128xf32>
    %52 = vector.shape_cast %51 : vector<128xf32> to vector<1x128xf32>
    %53 = arith.addf %50, %52 : vector<1x128xf32>
    %c2_29 = arith.constant 2 : index
    %c0_30 = arith.constant 0 : index
    %54 = vector.load %arg7[%c2_29, %c0_30] : memref<8x128xf32, #tpu.memory_space<vmem>>, vector<1x128xf32>
    tpu.vector_store %arg7[%c2_29, %c0_30], %53 {strides = array<i32>} : memref<8x128xf32, #tpu.memory_space<vmem>>, vector<1x128xf32>,
    %cst_31 = arith.constant dense<0.000000e+00> : vector<128xf32>
    %55 = vector.multi_reduction <add>, %34, %cst_31 [0] : vector<16x128xf32> to vector<128xf32>
    %56 = vector.shape_cast %55 : vector<128xf32> to vector<1x128xf32>
    %57 = vector.shape_cast %26 : vector<16x128xf32> to vector<16x1x128xf32>
    %58 = vector.shape_cast %30 : vector<16x128xf32> to vector<16x1x128xf32>
    %59 = vector.shape_cast %34 : vector<16x128xf32> to vector<16x1x128xf32>
    %60 = vector.shape_cast %26 : vector<16x128xf32> to vector<1x16x128xf32>
    %61 = vector.broadcast %57 : vector<16x1x128xf32> to vector<16x16x128xf32>
    %62 = vector.broadcast %60 : vector<1x16x128xf32> to vector<16x16x128xf32>
    %63 = arith.cmpf ogt, %61, %62 : vector<16x16x128xf32>
    %64 = arith.extui %63 : vector<16x16x128xi1> to vector<16x16x128xi32>
    %65 = arith.sitofp %64 : vector<16x16x128xi32> to vector<16x16x128xf32>
    %66 = vector.broadcast %57 : vector<16x1x128xf32> to vector<16x16x128xf32>
    %67 = vector.broadcast %60 : vector<1x16x128xf32> to vector<16x16x128xf32>
    %68 = arith.cmpf oge, %66, %67 : vector<16x16x128xf32>
    %69 = arith.extui %68 : vector<16x16x128xi1> to vector<16x16x128xi32>
    %70 = arith.sitofp %69 : vector<16x16x128xi32> to vector<16x16x128xf32>
    %71 = arith.addf %65, %70 : vector<16x16x128xf32>
    %72 = vector.broadcast %58 : vector<16x1x128xf32> to vector<16x16x128xf32>
    %73 = arith.mulf %72, %71 : vector<16x16x128xf32>
    %cst_32 = arith.constant dense<0.000000e+00> : vector<16x128xf32>
    %74 = vector.multi_reduction <add>, %73, %cst_32 [0] : vector<16x16x128xf32> to vector<16x128xf32>
    %c3 = arith.constant 3 : index
    %c0_33 = arith.constant 0 : index
    %75 = vector.load %arg7[%c3, %c0_33] : memref<8x128xf32, #tpu.memory_space<vmem>>, vector<1x128xf32>
    %76 = arith.mulf %34, %74 : vector<16x128xf32>
    %cst_34 = arith.constant dense<0.000000e+00> : vector<128xf32>
    %77 = vector.multi_reduction <add>, %76, %cst_34 [0] : vector<16x128xf32> to vector<128xf32>
    %78 = vector.shape_cast %77 : vector<128xf32> to vector<1x128xf32>
    %79 = arith.addf %75, %78 : vector<1x128xf32>
    %c3_35 = arith.constant 3 : index
    %c0_36 = arith.constant 0 : index
    %80 = vector.load %arg7[%c3_35, %c0_36] : memref<8x128xf32, #tpu.memory_space<vmem>>, vector<1x128xf32>
    tpu.vector_store %arg7[%c3_35, %c0_36], %79 {strides = array<i32>} : memref<8x128xf32, #tpu.memory_space<vmem>>, vector<1x128xf32>,
    %c0_i32_37 = arith.constant 0 : i32
    %81 = arith.subi %22, %c0_i32_37 : i32
    %c1_i32_38 = arith.constant 1 : i32
    %c1_i32_39 = arith.constant 1 : i32
    %82 = arith.subi %c1_i32_38, %c1_i32_39 : i32
    %83 = arith.addi %81, %82 : i32
    %c1_i32_40 = arith.constant 1 : i32
    %84 = arith.divsi %83, %c1_i32_40 : i32
    %c1_i32_41 = arith.constant 1 : i32
    %c0_i32_42 = arith.constant 0 : i32
    %c0_i32_43 = arith.constant 0 : i32
    %85 = arith.subi %84, %c0_i32_43 : i32
    %86 = arith.addi %c0_i32_43, %85 : i32
    %c1_i32_44 = arith.constant 1 : i32
    scf.for %arg8 = %c0_i32_43 to %86 step %c1_i32_44  : i32 {
      %166 = arith.muli %arg8, %c1_i32_41 : i32
      %167 = arith.addi %c0_i32_42, %166 : i32
      %c16_i32_90 = arith.constant 16 : i32
      %168 = arith.muli %167, %c16_i32_90 : i32
      %169 = tpu.assume_multiple %168, 16 : i32
      %170 = arith.index_cast %169 : i32 to index
      %c0_91 = arith.constant 0 : index
      %171 = vector.load %arg3[%170, %c0_91] : memref<16x128xf32, #tpu.memory_space<vmem>>, vector<16x128xf32>
      %c16_i32_92 = arith.constant 16 : i32
      %172 = arith.muli %167, %c16_i32_92 : i32
      %173 = tpu.assume_multiple %172, 16 : i32
      %174 = arith.index_cast %173 : i32 to index
      %c0_93 = arith.constant 0 : index
      %175 = vector.load %arg4[%174, %c0_93] : memref<16x128xf32, #tpu.memory_space<vmem>>, vector<16x128xf32>
      %c16_i32_94 = arith.constant 16 : i32
      %176 = arith.muli %167, %c16_i32_94 : i32
      %177 = tpu.assume_multiple %176, 16 : i32
      %178 = arith.index_cast %177 : i32 to index
      %c0_95 = arith.constant 0 : index
      %179 = vector.load %arg6[%178, %c0_95] : memref<16x128xf32, #tpu.memory_space<vmem>>, vector<16x128xf32>
      %180 = vector.shape_cast %171 : vector<16x128xf32> to vector<1x16x128xf32>
      %181 = vector.broadcast %57 : vector<16x1x128xf32> to vector<16x16x128xf32>
      %182 = vector.broadcast %180 : vector<1x16x128xf32> to vector<16x16x128xf32>
      %183 = arith.cmpf ogt, %181, %182 : vector<16x16x128xf32>
      %184 = arith.extui %183 : vector<16x16x128xi1> to vector<16x16x128xi32>
      %185 = arith.sitofp %184 : vector<16x16x128xi32> to vector<16x16x128xf32>
      %186 = vector.broadcast %57 : vector<16x1x128xf32> to vector<16x16x128xf32>
      %187 = vector.broadcast %180 : vector<1x16x128xf32> to vector<16x16x128xf32>
      %188 = arith.cmpf oge, %186, %187 : vector<16x16x128xf32>
      %189 = arith.extui %188 : vector<16x16x128xi1> to vector<16x16x128xi32>
      %190 = arith.sitofp %189 : vector<16x16x128xi32> to vector<16x16x128xf32>
      %191 = arith.addf %185, %190 : vector<16x16x128xf32>
      %192 = vector.broadcast %58 : vector<16x1x128xf32> to vector<16x16x128xf32>
      %193 = arith.mulf %192, %191 : vector<16x16x128xf32>
      %cst_96 = arith.constant dense<0.000000e+00> : vector<16x128xf32>
      %194 = vector.multi_reduction <add>, %193, %cst_96 [0] : vector<16x16x128xf32> to vector<16x128xf32>
      %195 = vector.broadcast %59 : vector<16x1x128xf32> to vector<16x16x128xf32>
      %196 = arith.mulf %195, %191 : vector<16x16x128xf32>
      %cst_97 = arith.constant dense<0.000000e+00> : vector<16x128xf32>
      %197 = vector.multi_reduction <add>, %196, %cst_97 [0] : vector<16x16x128xf32> to vector<16x128xf32>
      %cst_98 = arith.constant dense<0.000000e+00> : vector<128xf32>
      %198 = vector.multi_reduction <add>, %175, %cst_98 [0] : vector<16x128xf32> to vector<128xf32>
      %199 = vector.shape_cast %198 : vector<128xf32> to vector<1x128xf32>
      %200 = arith.mulf %179, %194 : vector<16x128xf32>
      %201 = arith.mulf %175, %197 : vector<16x128xf32>
      %202 = arith.subf %200, %201 : vector<16x128xf32>
      %cst_99 = arith.constant dense<0.000000e+00> : vector<128xf32>
      %203 = vector.multi_reduction <add>, %202, %cst_99 [0] : vector<16x128xf32> to vector<128xf32>
      %204 = vector.shape_cast %203 : vector<128xf32> to vector<1x128xf32>
      %cst_100 = arith.constant 2.000000e+00 : f32
      %205 = vector.broadcast %cst_100 : f32 to vector<1x128xf32>
      %206 = arith.mulf %205, %56 : vector<1x128xf32>
      %207 = arith.mulf %206, %199 : vector<1x128xf32>
      %208 = arith.addf %204, %207 : vector<1x128xf32>
      %c3_101 = arith.constant 3 : index
      %c0_102 = arith.constant 0 : index
      %209 = vector.load %arg7[%c3_101, %c0_102] : memref<8x128xf32, #tpu.memory_space<vmem>>, vector<1x128xf32>
      %210 = arith.addf %209, %208 : vector<1x128xf32>
      %c3_103 = arith.constant 3 : index
      %c0_104 = arith.constant 0 : index
      %211 = vector.load %arg7[%c3_103, %c0_104] : memref<8x128xf32, #tpu.memory_space<vmem>>, vector<1x128xf32>
      tpu.vector_store %arg7[%c3_103, %c0_104], %210 {strides = array<i32>} : memref<8x128xf32, #tpu.memory_space<vmem>>, vector<1x128xf32>,
    }
    %c1_i32_45 = arith.constant 1 : i32
    %c0_46 = arith.constant 0 : index
    %c0_47 = arith.constant 0 : index
    %87 = vector.load %arg7[%c0_46, %c0_47] : memref<8x128xf32, #tpu.memory_space<vmem>>, vector<1x128xf32>
    %c1_48 = arith.constant 1 : index
    %c0_49 = arith.constant 0 : index
    %88 = vector.load %arg7[%c1_48, %c0_49] : memref<8x128xf32, #tpu.memory_space<vmem>>, vector<1x128xf32>
    %c2_50 = arith.constant 2 : index
    %c0_51 = arith.constant 0 : index
    %89 = vector.load %arg7[%c2_50, %c0_51] : memref<8x128xf32, #tpu.memory_space<vmem>>, vector<1x128xf32>
    %c3_52 = arith.constant 3 : index
    %c0_53 = arith.constant 0 : index
    %90 = vector.load %arg7[%c3_52, %c0_53] : memref<8x128xf32, #tpu.memory_space<vmem>>, vector<1x128xf32>
    %cst_54 = arith.constant 5.000000e-01 : f32
    %91 = vector.broadcast %cst_54 : f32 to vector<1x128xf32>
    %92 = arith.mulf %91, %90 : vector<1x128xf32>
    %93 = arith.sitofp %0 : i32 to f32
    %94 = arith.subf %88, %87 : vector<1x128xf32>
    %95 = arith.subf %89, %87 : vector<1x128xf32>
    %96 = vector.broadcast %93 : f32 to vector<1x128xf32>
    %97 = arith.subf %96, %88 : vector<1x128xf32>
    %98 = arith.subf %97, %89 : vector<1x128xf32>
    %99 = arith.addf %98, %87 : vector<1x128xf32>
    %100 = arith.addf %87, %99 : vector<1x128xf32>
    %cst_55 = arith.constant 0.000000e+00 : f32
    %101 = arith.cmpf ogt, %93, %cst_55 : f32
    %cst_56 = arith.constant 0.000000e+00 : f32
    %102 = arith.cmpf ogt, %93, %cst_56 : f32
    %cst_57 = arith.constant 1.000000e+00 : f32
    %103 = arith.select %102, %93, %cst_57 : f32
    %104 = vector.broadcast %103 : f32 to vector<1x128xf32>
    %105 = arith.divf %100, %104 : vector<1x128xf32>
    %cst_58 = arith.constant 0.000000e+00 : f32
    %106 = vector.broadcast %cst_58 : f32 to vector<1x128xf32>
    %107 = arith.select %101, %105, %106 : vector<1x128xf32>
    %108 = arith.addf %87, %94 : vector<1x128xf32>
    %cst_59 = arith.constant 0.000000e+00 : f32
    %109 = vector.broadcast %cst_59 : f32 to vector<1x128xf32>
    %110 = arith.cmpf ogt, %108, %109 : vector<1x128xf32>
    %cst_60 = arith.constant 0.000000e+00 : f32
    %111 = vector.broadcast %cst_60 : f32 to vector<1x128xf32>
    %112 = arith.cmpf ogt, %108, %111 : vector<1x128xf32>
    %cst_61 = arith.constant 1.000000e+00 : f32
    %113 = vector.broadcast %cst_61 : f32 to vector<1x128xf32>
    %114 = arith.select %112, %108, %113 : vector<1x128xi1>, vector<1x128xf32>
    %115 = arith.divf %87, %114 : vector<1x128xf32>
    %cst_62 = arith.constant 0.000000e+00 : f32
    %116 = vector.broadcast %cst_62 : f32 to vector<1x128xf32>
    %117 = arith.select %110, %115, %116 : vector<1x128xi1>, vector<1x128xf32>
    %cst_63 = arith.constant 0.000000e+00 : f32
    %118 = vector.broadcast %cst_63 : f32 to vector<1x128xf32>
    %119 = arith.cmpf ogt, %89, %118 : vector<1x128xf32>
    %cst_64 = arith.constant 0.000000e+00 : f32
    %120 = vector.broadcast %cst_64 : f32 to vector<1x128xf32>
    %121 = arith.cmpf ogt, %89, %120 : vector<1x128xf32>
    %cst_65 = arith.constant 1.000000e+00 : f32
    %122 = vector.broadcast %cst_65 : f32 to vector<1x128xf32>
    %123 = arith.select %121, %89, %122 : vector<1x128xi1>, vector<1x128xf32>
    %124 = arith.divf %87, %123 : vector<1x128xf32>
    %cst_66 = arith.constant 0.000000e+00 : f32
    %125 = vector.broadcast %cst_66 : f32 to vector<1x128xf32>
    %126 = arith.select %119, %124, %125 : vector<1x128xi1>, vector<1x128xf32>
    %cst_67 = arith.constant 2.000000e+00 : f32
    %127 = vector.broadcast %cst_67 : f32 to vector<1x128xf32>
    %128 = arith.mulf %127, %87 : vector<1x128xf32>
    %cst_68 = arith.constant 2.000000e+00 : f32
    %129 = vector.broadcast %cst_68 : f32 to vector<1x128xf32>
    %130 = arith.mulf %129, %87 : vector<1x128xf32>
    %131 = arith.addf %130, %94 : vector<1x128xf32>
    %132 = arith.addf %131, %95 : vector<1x128xf32>
    %cst_69 = arith.constant 0.000000e+00 : f32
    %133 = vector.broadcast %cst_69 : f32 to vector<1x128xf32>
    %134 = arith.cmpf ogt, %132, %133 : vector<1x128xf32>
    %cst_70 = arith.constant 0.000000e+00 : f32
    %135 = vector.broadcast %cst_70 : f32 to vector<1x128xf32>
    %136 = arith.cmpf ogt, %132, %135 : vector<1x128xf32>
    %cst_71 = arith.constant 1.000000e+00 : f32
    %137 = vector.broadcast %cst_71 : f32 to vector<1x128xf32>
    %138 = arith.select %136, %132, %137 : vector<1x128xi1>, vector<1x128xf32>
    %139 = arith.divf %128, %138 : vector<1x128xf32>
    %cst_72 = arith.constant 0.000000e+00 : f32
    %140 = vector.broadcast %cst_72 : f32 to vector<1x128xf32>
    %141 = arith.select %134, %139, %140 : vector<1x128xi1>, vector<1x128xf32>
    %142 = vector.broadcast %93 : f32 to vector<1x128xf32>
    %143 = arith.subf %142, %89 : vector<1x128xf32>
    %144 = arith.mulf %89, %143 : vector<1x128xf32>
    %cst_73 = arith.constant 0.000000e+00 : f32
    %145 = vector.broadcast %cst_73 : f32 to vector<1x128xf32>
    %146 = arith.cmpf ogt, %144, %145 : vector<1x128xf32>
    %cst_74 = arith.constant 0.000000e+00 : f32
    %147 = vector.broadcast %cst_74 : f32 to vector<1x128xf32>
    %148 = arith.cmpf ogt, %144, %147 : vector<1x128xf32>
    %cst_75 = arith.constant 1.000000e+00 : f32
    %149 = vector.broadcast %cst_75 : f32 to vector<1x128xf32>
    %150 = arith.select %148, %144, %149 : vector<1x128xi1>, vector<1x128xf32>
    %151 = arith.divf %92, %150 : vector<1x128xf32>
    %cst_76 = arith.constant 0.000000e+00 : f32
    %152 = vector.broadcast %cst_76 : f32 to vector<1x128xf32>
    %153 = arith.select %146, %151, %152 : vector<1x128xi1>, vector<1x128xf32>
    %cst_77 = arith.constant 0.000000e+00 : f32
    %154 = vector.broadcast %cst_77 : f32 to vector<1x128xf32>
    %155 = arith.cmpf ogt, %144, %154 : vector<1x128xf32>
    %156 = arith.extui %155 : vector<1x128xi1> to vector<1x128xi32>
    %157 = arith.sitofp %156 : vector<1x128xi32> to vector<1x128xf32>
    %c0_78 = arith.constant 0 : index
    %c0_79 = arith.constant 0 : index
    %158 = vector.load %arg5[%c0_78, %c0_79] : memref<8x128xf32, #tpu.memory_space<vmem>>, vector<1x128xf32>
    tpu.vector_store %arg5[%c0_78, %c0_79], %107 {strides = array<i32>} : memref<8x128xf32, #tpu.memory_space<vmem>>, vector<1x128xf32>,
    %c1_80 = arith.constant 1 : index
    %c0_81 = arith.constant 0 : index
    %159 = vector.load %arg5[%c1_80, %c0_81] : memref<8x128xf32, #tpu.memory_space<vmem>>, vector<1x128xf32>
    tpu.vector_store %arg5[%c1_80, %c0_81], %117 {strides = array<i32>} : memref<8x128xf32, #tpu.memory_space<vmem>>, vector<1x128xf32>,
    %c2_82 = arith.constant 2 : index
    %c0_83 = arith.constant 0 : index
    %160 = vector.load %arg5[%c2_82, %c0_83] : memref<8x128xf32, #tpu.memory_space<vmem>>, vector<1x128xf32>
    tpu.vector_store %arg5[%c2_82, %c0_83], %126 {strides = array<i32>} : memref<8x128xf32, #tpu.memory_space<vmem>>, vector<1x128xf32>,
    %c3_84 = arith.constant 3 : index
    %c0_85 = arith.constant 0 : index
    %161 = vector.load %arg5[%c3_84, %c0_85] : memref<8x128xf32, #tpu.memory_space<vmem>>, vector<1x128xf32>
    tpu.vector_store %arg5[%c3_84, %c0_85], %141 {strides = array<i32>} : memref<8x128xf32, #tpu.memory_space<vmem>>, vector<1x128xf32>,
    %c4 = arith.constant 4 : index
    %c0_86 = arith.constant 0 : index
    %162 = vector.load %arg5[%c4, %c0_86] : memref<8x128xf32, #tpu.memory_space<vmem>>, vector<1x128xf32>
    tpu.vector_store %arg5[%c4, %c0_86], %153 {strides = array<i32>} : memref<8x128xf32, #tpu.memory_space<vmem>>, vector<1x128xf32>,
    %c5 = arith.constant 5 : index
    %c0_87 = arith.constant 0 : index
    %163 = vector.load %arg5[%c5, %c0_87] : memref<8x128xf32, #tpu.memory_space<vmem>>, vector<1x128xf32>
    tpu.vector_store %arg5[%c5, %c0_87], %157 {strides = array<i32>} : memref<8x128xf32, #tpu.memory_space<vmem>>, vector<1x128xf32>,
    %cst_88 = arith.constant 0.000000e+00 : f32
    %164 = vector.broadcast %cst_88 : f32 to vector<2x128xf32>
    %c6 = arith.constant 6 : index
    %c0_89 = arith.constant 0 : index
    %165 = vector.load %arg5[%c6, %c0_89] : memref<8x128xf32, #tpu.memory_space<vmem>>, vector<2x128xf32>
    tpu.vector_store %arg5[%c6, %c0_89], %164 {strides = array<i32>} : memref<8x128xf32, #tpu.memory_space<vmem>>, vector<2x128xf32>,
    return
  }
  func.func @transform_0(%arg0: i32, %arg1: memref<1xi32, #tpu.memory_space<smem>>) -> (i32, i32) {
    %c0_i32 = arith.constant 0 : i32
    %c0_i32_0 = arith.constant 0 : i32
    return %c0_i32, %arg0 : i32, i32
  }
  func.func @transform_1(%arg0: i32, %arg1: memref<1xi32, #tpu.memory_space<smem>>) -> (i32, i32) {
    %c0_i32 = arith.constant 0 : i32
    %c0_i32_0 = arith.constant 0 : i32
    return %c0_i32, %arg0 : i32, i32
  }
  func.func @transform_2(%arg0: i32, %arg1: memref<1xi32, #tpu.memory_space<smem>>) -> (i32, i32) {
    %c0_i32 = arith.constant 0 : i32
    %c0_i32_0 = arith.constant 0 : i32
    return %c0_i32, %arg0 : i32, i32
  }
  func.func @transform_3(%arg0: i32, %arg1: memref<1xi32, #tpu.memory_space<smem>>) -> (i32, i32) {
    %c0_i32 = arith.constant 0 : i32
    %c0_i32_0 = arith.constant 0 : i32
    return %c0_i32, %arg0 : i32, i32
  }
}

</mosaic_0001>

<llo_original>
// kernel: tpu_custom_call.1
$region0: #{tpu_custom_call.1}
  #allocation0 [shape = 'u32[]', space=smem, size = 0x4, offset = 0x4, fixed_abs, tag = 'smem constant byte address 0x4 - core index']
  #allocation1 [shape = 'u32[144,128]{1,0:T(1,128)}', space=vmem, size = 0x12000, scoped, tag = 'internal scratch']
  #allocation2 [shape = 'f32[16,128]{1,0:T(8,128)}', space=vmem, size = 0x2000, scoped, tag = 'scratch operand']
  #allocation3 [shape = 'f32[8,128]{1,0:T(8,128)}', space=vmem, size = 0x1000, scoped, tag = 'scratch operand']
  #allocation4 [shape = 's32[1]{0}', space=sflag, size = 0x4, scoped, tag = 'scoped memory for tpu_custom_call.1']
  #allocation5 [shape = 's32[1]{0:T(128)S(6)}', space=smem, size = 0x200, scoped, tag = 'prefetched SMEM operand 0']
  %s0 = inlined_call_operand.<no memory space> [shape: s32[1], index: 0, kind: input, shape index: {}]
  %s1 = inlined_call_operand.hbm [shape: f32[16,128], index: 1, kind: input, shape index: {}]
  %s2 = inlined_call_operand.hbm [shape: f32[16,128], index: 2, kind: input, shape index: {}]
  %s3 = inlined_call_operand.hbm [shape: f32[16,128], index: 3, kind: input, shape index: {}]
  %s4 = inlined_call_operand.hbm [shape: f32[8,128], index: 4, kind: output, shape index: {}]
  %s5 = sld [smem:[#allocation0]]
  $region34: #{tpu_custom_call.1} parent=0
    _
  %s7 = ssub.s32 1, %s5
  %s8 = scalar_select 0, %s7, %s5
  %9 = sst [smem:[#allocation5]] %s0
  $region1: #{tpu_custom_call.1} parent=0
    #allocation6 [shape = 'u8[8192]{0}', space=vmem, size = 0x2000, scoped, tag = 'input window, operand 1, single buffered']
    #allocation7 [shape = 's32[1]{0}', space=sflag, size = 0x4, scoped, tag = 'scoped memory for tpu_custom_call.1']
    #allocation8 [shape = 's32[1]{0}', space=sflag, size = 0x4, scoped, tag = 'scoped memory for tpu_custom_call.1']
    #allocation9 [shape = 'u8[8192]{0}', space=vmem, size = 0x2000, scoped, tag = 'input window, operand 2, single buffered']
    #allocation10 [shape = 's32[1]{0}', space=sflag, size = 0x4, scoped, tag = 'scoped memory for tpu_custom_call.1']
    #allocation11 [shape = 'u8[8192]{0}', space=vmem, size = 0x2000, scoped, tag = 'input window, operand 3, single buffered']
    #allocation12 [shape = 'u8[4096]{0}', space=vmem, size = 0x1000, scoped, tag = 'output window, operand 0, single buffered']
    %10 = vsyncpa [#allocation7], 0
    %11 = vsyncpa [#allocation10], 0
    %12 = vsyncpa [#allocation8], 0
    // Predicated region
    $region2: #{tpu_custom_call.1} parent=1 // pred_check
      _
    $region3: #{tpu_custom_call.1} parent=1 // pred_check_branch
      %14 = sbr.rel (0) target = $region5
    $region4: #{tpu_custom_call.1} parent=1 // pred_region
      %s16 = ssub.s32 256, 256
      %17 = vsyncadd [#allocation7], %s16
      %s18 = sshll.u32 [#allocation6], 4
      %s19 = int_to_ptr.vmem [resolvable:$true] %s18
      %24 = dma.hbm_to_vmem [thread:$0]  %s1, 256, %s19, [#allocation7], 128, 128, 8
    $region5: #{tpu_custom_call.1} parent=1 // pred_fallthru
      _
    // Predicated region
    $region6: #{tpu_custom_call.1} parent=1 // pred_check
      _
    $region7: #{tpu_custom_call.1} parent=1 // pred_check_branch
      %26 = sbr.rel (0) target = $region9
    $region8: #{tpu_custom_call.1} parent=1 // pred_region
      %s28 = ssub.s32 256, 256
      %29 = vsyncadd [#allocation10], %s28
      %s30 = sshll.u32 [#allocation9], 4
      %s31 = int_to_ptr.vmem [resolvable:$true] %s30
      %36 = dma.hbm_to_vmem [thread:$0]  %s2, 256, %s31, [#allocation10], 128, 128, 8
    $region9: #{tpu_custom_call.1} parent=1 // pred_fallthru
      _
    // Predicated region
    $region10: #{tpu_custom_call.1} parent=1 // pred_check
      _
    $region11: #{tpu_custom_call.1} parent=1 // pred_check_branch
      %38 = sbr.rel (0) target = $region13
    $region12: #{tpu_custom_call.1} parent=1 // pred_region
      %s40 = ssub.s32 256, 256
      %41 = vsyncadd [#allocation10], %s40
      %s42 = sshll.u32 [#allocation11], 4
      %s43 = int_to_ptr.vmem [resolvable:$true] %s42
      %48 = dma.hbm_to_vmem [thread:$0]  %s3, 256, %s43, [#allocation10], 128, 128, 8
    $region13: #{tpu_custom_call.1} parent=1 // pred_fallthru
      _
    // Predicated region
    $region14: #{tpu_custom_call.1} parent=1 // pred_check
      _
    $region15: #{tpu_custom_call.1} parent=1 // pred_check_branch
      %50 = sbr.rel (0) target = $region17
    $region16: #{tpu_custom_call.1} parent=1 // pred_region
      %51 = dma.done [#allocation7], 256
    $region17: #{tpu_custom_call.1} parent=1 // pred_fallthru
      _
    // Predicated region
    $region18: #{tpu_custom_call.1} parent=1 // pred_check
      _
    $region19: #{tpu_custom_call.1} parent=1 // pred_check_branch
      %53 = sbr.rel (0) target = $region21
    $region20: #{tpu_custom_call.1} parent=1 // pred_region
      %54 = dma.done [#allocation10], 256
    $region21: #{tpu_custom_call.1} parent=1 // pred_fallthru
      _
    // Predicated region
    $region22: #{tpu_custom_call.1} parent=1 // pred_check
      _
    $region23: #{tpu_custom_call.1} parent=1 // pred_check_branch
      %56 = sbr.rel (0) target = $region25
    $region24: #{tpu_custom_call.1} parent=1 // pred_region
      %57 = dma.done [#allocation10], 256
    $region25: #{tpu_custom_call.1} parent=1 // pred_fallthru
      _
    %s58 = sld [smem:[#allocation5]]
    %59 = vst [vmem:[#allocation3] sm:$0xff] 0.0
    %v60 = vlaneseq
    %v61 = vshrl.u32 %v60, 7
    %v62 = vadd.s32 %v61, 8
    %v63 = vstv 0
    %v64 = vadd.s32 %v61, %v63
    %v65 = vadd.s32 %v62, %v63
    %v66 = vstv %s58
    %vm67 = vcmp.lt.s32.totalorder %v64, %v66
    %vm68 = vcmp.lt.s32.totalorder %v65, %v66
    %v69 = vsel %vm67, 1, 0
    %v70 = vsel %vm68, 1, 0
    %v71 = vcvt.s32.f32 %v69
    %v72 = vcvt.s32.f32 %v70
    %v73 = vld [vmem:[#allocation11] sm:$0xff]
    %v74 = vld [vmem:[#allocation11 + $0x8] sm:$0xff]
    %v75 = vsub.f32 1.0, %v73
    %v76 = vsub.f32 1.0, %v74
    %v77 = vmul.f32 %v75, %v71
    %v78 = vmul.f32 %v76, %v72
    %79 = vst [vmem:[#allocation2] sm:$0xff] %v77
    %80 = vst [vmem:[#allocation2 + $0x8] sm:$0xff] %v78
    %v81 = vld [vmem:[#allocation9] sm:$0xff]
    %v82 = vld [vmem:[#allocation9 + $0x8] sm:$0xff]
    %v83 = vld [vmem:[#allocation11] sm:$0xff]
    %v84 = vld [vmem:[#allocation11 + $0x8] sm:$0xff]
    %v85 = vld [vmem:[#allocation2] sm:$0xff]
    %v86 = vld [vmem:[#allocation2 + $0x8] sm:$0xff]
    %v87 = vld [vmem:[#allocation6] sm:$0xff]
    %v88 = vld [vmem:[#allocation6 + $0x8] sm:$0xff]
    %v89 = vld [vmem:[#allocation3] sm:$0x1]
    %v90 = vmul.f32 %v83, %v87
    %v91 = vmul.f32 %v84, %v88
    %v92 = vadd.f32 %v90, %v91
    %v93 = vrot.slane %v92, 4
    %v94 = vadd.f32 %v92, %v93
    %v95 = vrot.slane %v94, 2
    %v96 = vadd.f32 %v94, %v95
    %v97 = vrot.slane %v96, 1
    %v98 = vadd.f32 %v96, %v97
    %v99 = vadd.f32 %v89, %v98
    %100 = vst [vmem:[#allocation3] sm:$0x1] %v99
    %v101 = vld [vmem:[#allocation3 + $0x1] sm:$0x1]
    %v102 = vadd.f32 %v87, %v88
    %v103 = vrot.slane %v102, 4
    %v104 = vadd.f32 %v102, %v103
    %v105 = vrot.slane %v104, 2
    %v106 = vadd.f32 %v104, %v105
    %v107 = vrot.slane %v106, 1
    %v108 = vadd.f32 %v106, %v107
    %v109 = vadd.f32 %v101, %v108
    %110 = vst [vmem:[#allocation3 + $0x1] sm:$0x1] %v109
    %v111 = vld [vmem:[#allocation3 + $0x2] sm:$0x1]
    %v112 = vadd.f32 %v83, %v84
    %v113 = vrot.slane %v112, 4
    %v114 = vadd.f32 %v112, %v113
    %v115 = vrot.slane %v114, 2
    %v116 = vadd.f32 %v114, %v115
    %v117 = vrot.slane %v116, 1
    %v118 = vadd.f32 %v116, %v117
    %v119 = vadd.f32 %v111, %v118
    %120 = vst [vmem:[#allocation3 + $0x2] sm:$0x1] %v119
    %v123 = vcombine.high %v81, %v81
    %v125 = vunpack.c.l.s4 1966171168
    %v126 = vunpack.c.0.s8 %v125
    %v127 = vlaneseq
    %v128 = vshrl.u32 %v127, 7
    %v129 = vsub.s32 %v126, %v128
    %v130 = vrot.slane %v81, %v129
    %v132 = vunpack.c.l.s4 1966171168
    %v133 = vunpack.c.0.s8 %v132
    %v134 = vlaneseq
    %v135 = vshrl.u32 %v134, 7
    %v136 = vsub.s32 %v133, %v135
    %v137 = vrot.slane %v123, %v136
    %v138 = vcombine.high %v130, %v130
    %v139 = vcombine.high %v137, %v137
    %v141 = vunpack.c.l.s4 1966171168
    %v142 = vunpack.c.0.s8 %v141
    %v143 = vlaneseq
    %v144 = vshrl.u32 %v143, 7
    %v145 = vsub.s32 %v142, %v144
    %v146 = vrot.slane %v130, %v145
    %v148 = vunpack.c.l.s4 1966171168
    %v149 = vunpack.c.0.s8 %v148
    %v150 = vlaneseq
    %v151 = vshrl.u32 %v150, 7
    %v152 = vsub.s32 %v149, %v151
    %v153 = vrot.slane %v137, %v152
    %v155 = vunpack.c.l.s4 1966171168
    %v156 = vunpack.c.0.s8 %v155
    %v157 = vlaneseq
    %v158 = vshrl.u32 %v157, 7
    %v159 = vsub.s32 %v156, %v158
    %v160 = vrot.slane %v138, %v159
    %v162 = vunpack.c.l.s4 1966171168
    %v163 = vunpack.c.0.s8 %v162
    %v164 = vlaneseq
    %v165 = vshrl.u32 %v164, 7
    %v166 = vsub.s32 %v163, %v165
    %v167 = vrot.slane %v139, %v166
    %v168 = vcombine.high %v146, %v146
    %v169 = vcombine.high %v153, %v153
    %v170 = vcombine.high %v160, %v160
    %v171 = vcombine.high %v167, %v167
    %v172 = vcombine.high %v82, %v82
    %v174 = vunpack.c.l.s4 1966171168
    %v175 = vunpack.c.0.s8 %v174
    %v176 = vlaneseq
    %v177 = vshrl.u32 %v176, 7
    %v178 = vsub.s32 %v175, %v177
    %v179 = vrot.slane %v82, %v178
    %v181 = vunpack.c.l.s4 1966171168
    %v182 = vunpack.c.0.s8 %v181
    %v183 = vlaneseq
    %v184 = vshrl.u32 %v183, 7
    %v185 = vsub.s32 %v182, %v184
    %v186 = vrot.slane %v172, %v185
    %v187 = vcombine.high %v179, %v179
    %v188 = vcombine.high %v186, %v186
    %v190 = vunpack.c.l.s4 1966171168
    %v191 = vunpack.c.0.s8 %v190
    %v192 = vlaneseq
    %v193 = vshrl.u32 %v192, 7
    %v194 = vsub.s32 %v191, %v193
    %v195 = vrot.slane %v179, %v194
    %v197 = vunpack.c.l.s4 1966171168
    %v198 = vunpack.c.0.s8 %v197
    %v199 = vlaneseq
    %v200 = vshrl.u32 %v199, 7
    %v201 = vsub.s32 %v198, %v200
    %v202 = vrot.slane %v186, %v201
    %v204 = vunpack.c.l.s4 1966171168
    %v205 = vunpack.c.0.s8 %v204
    %v206 = vlaneseq
    %v207 = vshrl.u32 %v206, 7
    %v208 = vsub.s32 %v205, %v207
    %v209 = vrot.slane %v187, %v208
    %v211 = vunpack.c.l.s4 1966171168
    %v212 = vunpack.c.0.s8 %v211
    %v213 = vlaneseq
    %v214 = vshrl.u32 %v213, 7
    %v215 = vsub.s32 %v212, %v214
    %v216 = vrot.slane %v188, %v215
    %v217 = vcombine.high %v195, %v195
    %v218 = vcombine.high %v202, %v202
    %v219 = vcombine.high %v209, %v209
    %v220 = vcombine.high %v216, %v216
    %v223 = vcombine.high %v83, %v83
    %v225 = vunpack.c.l.s4 1966171168
    %v226 = vunpack.c.0.s8 %v225
    %v227 = vlaneseq
    %v228 = vshrl.u32 %v227, 7
    %v229 = vsub.s32 %v226, %v228
    %v230 = vrot.slane %v83, %v229
    %v232 = vunpack.c.l.s4 1966171168
    %v233 = vunpack.c.0.s8 %v232
    %v234 = vlaneseq
    %v235 = vshrl.u32 %v234, 7
    %v236 = vsub.s32 %v233, %v235
    %v237 = vrot.slane %v223, %v236
    %v238 = vcombine.high %v230, %v230
    %v239 = vcombine.high %v237, %v237
    %v241 = vunpack.c.l.s4 1966171168
    %v242 = vunpack.c.0.s8 %v241
    %v243 = vlaneseq
    %v244 = vshrl.u32 %v243, 7
    %v245 = vsub.s32 %v242, %v244
    %v246 = vrot.slane %v230, %v245
    %v248 = vunpack.c.l.s4 1966171168
    %v249 = vunpack.c.0.s8 %v248
    %v250 = vlaneseq
    %v251 = vshrl.u32 %v250, 7
    %v252 = vsub.s32 %v249, %v251
    %v253 = vrot.slane %v237, %v252
    %v255 = vunpack.c.l.s4 1966171168
    %v256 = vunpack.c.0.s8 %v255
    %v257 = vlaneseq
    %v258 = vshrl.u32 %v257, 7
    %v259 = vsub.s32 %v256, %v258
    %v260 = vrot.slane %v238, %v259
    %v262 = vunpack.c.l.s4 1966171168
    %v263 = vunpack.c.0.s8 %v262
    %v264 = vlaneseq
    %v265 = vshrl.u32 %v264, 7
    %v266 = vsub.s32 %v263, %v265
    %v267 = vrot.slane %v239, %v266
    %v268 = vcombine.high %v246, %v246
    %v269 = vcombine.high %v253, %v253
    %v270 = vcombine.high %v260, %v260
    %v271 = vcombine.high %v267, %v267
    %v272 = vcombine.high %v84, %v84
    %v274 = vunpack.c.l.s4 1966171168
    %v275 = vunpack.c.0.s8 %v274
    %v276 = vlaneseq
    %v277 = vshrl.u32 %v276, 7
    %v278 = vsub.s32 %v275, %v277
    %v279 = vrot.slane %v84, %v278
    %v281 = vunpack.c.l.s4 1966171168
    %v282 = vunpack.c.0.s8 %v281
    %v283 = vlaneseq
    %v284 = vshrl.u32 %v283, 7
    %v285 = vsub.s32 %v282, %v284
    %v286 = vrot.slane %v272, %v285
    %v287 = vcombine.high %v279, %v279
    %v288 = vcombine.high %v286, %v286
    %v290 = vunpack.c.l.s4 1966171168
    %v291 = vunpack.c.0.s8 %v290
    %v292 = vlaneseq
    %v293 = vshrl.u32 %v292, 7
    %v294 = vsub.s32 %v291, %v293
    %v295 = vrot.slane %v279, %v294
    %v297 = vunpack.c.l.s4 1966171168
    %v298 = vunpack.c.0.s8 %v297
    %v299 = vlaneseq
    %v300 = vshrl.u32 %v299, 7
    %v301 = vsub.s32 %v298, %v300
    %v302 = vrot.slane %v286, %v301
    %v304 = vunpack.c.l.s4 1966171168
    %v305 = vunpack.c.0.s8 %v304
    %v306 = vlaneseq
    %v307 = vshrl.u32 %v306, 7
    %v308 = vsub.s32 %v305, %v307
    %v309 = vrot.slane %v287, %v308
    %v311 = vunpack.c.l.s4 1966171168
    %v312 = vunpack.c.0.s8 %v311
    %v313 = vlaneseq
    %v314 = vshrl.u32 %v313, 7
    %v315 = vsub.s32 %v312, %v314
    %v316 = vrot.slane %v288, %v315
    %v317 = vcombine.high %v295, %v295
    %v318 = vcombine.high %v302, %v302
    %v319 = vcombine.high %v309, %v309
    %v320 = vcombine.high %v316, %v316
    %v321 = vlaneseq
    %v322 = vshrl.u32 %v321, 7
    %v323 = vsub.s32 0, %v322
    %v324 = vrot.slane %v146, %v323
    %v325 = vlaneseq
    %v326 = vshrl.u32 %v325, 7
    %v327 = vsub.s32 0, %v326
    %v328 = vrot.slane %v160, %v327
    %v329 = vlaneseq
    %v330 = vshrl.u32 %v329, 7
    %v331 = vsub.s32 0, %v330
    %v332 = vrot.slane %v168, %v331
    %v333 = vlaneseq
    %v334 = vshrl.u32 %v333, 7
    %v335 = vsub.s32 0, %v334
    %v336 = vrot.slane %v170, %v335
    %v337 = vlaneseq
    %v338 = vshrl.u32 %v337, 7
    %v339 = vsub.s32 0, %v338
    %v340 = vrot.slane %v153, %v339
    %v341 = vlaneseq
    %v342 = vshrl.u32 %v341, 7
    %v343 = vsub.s32 0, %v342
    %v344 = vrot.slane %v167, %v343
    %v345 = vlaneseq
    %v346 = vshrl.u32 %v345, 7
    %v347 = vsub.s32 0, %v346
    %v348 = vrot.slane %v169, %v347
    %v349 = vlaneseq
    %v350 = vshrl.u32 %v349, 7
    %v351 = vsub.s32 0, %v350
    %v352 = vrot.slane %v171, %v351
    %v353 = vlaneseq
    %v354 = vshrl.u32 %v353, 7
    %v355 = vsub.s32 0, %v354
    %v356 = vrot.slane %v195, %v355
    %v357 = vlaneseq
    %v358 = vshrl.u32 %v357, 7
    %v359 = vsub.s32 0, %v358
    %v360 = vrot.slane %v209, %v359
    %v361 = vlaneseq
    %v362 = vshrl.u32 %v361, 7
    %v363 = vsub.s32 0, %v362
    %v364 = vrot.slane %v217, %v363
    %v365 = vlaneseq
    %v366 = vshrl.u32 %v365, 7
    %v367 = vsub.s32 0, %v366
    %v368 = vrot.slane %v219, %v367
    %v369 = vlaneseq
    %v370 = vshrl.u32 %v369, 7
    %v371 = vsub.s32 0, %v370
    %v372 = vrot.slane %v202, %v371
    %v373 = vlaneseq
    %v374 = vshrl.u32 %v373, 7
    %v375 = vsub.s32 0, %v374
    %v376 = vrot.slane %v216, %v375
    %v377 = vlaneseq
    %v378 = vshrl.u32 %v377, 7
    %v379 = vsub.s32 0, %v378
    %v380 = vrot.slane %v218, %v379
    %v381 = vlaneseq
    %v382 = vshrl.u32 %v381, 7
    %v383 = vsub.s32 0, %v382
    %v384 = vrot.slane %v220, %v383
    %vm401 = vcmp.gt.f32.partialorder %v324, %v81
    %vm402 = vcmp.gt.f32.partialorder %v324, %v82
    %vm403 = vcmp.gt.f32.partialorder %v328, %v81
    %vm404 = vcmp.gt.f32.partialorder %v328, %v82
    %vm405 = vcmp.gt.f32.partialorder %v332, %v81
    %vm406 = vcmp.gt.f32.partialorder %v332, %v82
    %vm407 = vcmp.gt.f32.partialorder %v336, %v81
    %vm408 = vcmp.gt.f32.partialorder %v336, %v82
    %vm409 = vcmp.gt.f32.partialorder %v340, %v81
    %vm410 = vcmp.gt.f32.partialorder %v340, %v82
    %vm411 = vcmp.gt.f32.partialorder %v344, %v81
    %vm412 = vcmp.gt.f32.partialorder %v344, %v82
    %vm413 = vcmp.gt.f32.partialorder %v348, %v81
    %vm414 = vcmp.gt.f32.partialorder %v348, %v82
    %vm415 = vcmp.gt.f32.partialorder %v352, %v81
    %vm416 = vcmp.gt.f32.partialorder %v352, %v82
    %vm417 = vcmp.gt.f32.partialorder %v356, %v81
    %vm418 = vcmp.gt.f32.partialorder %v356, %v82
    %vm419 = vcmp.gt.f32.partialorder %v360, %v81
    %vm420 = vcmp.gt.f32.partialorder %v360, %v82
    %vm421 = vcmp.gt.f32.partialorder %v364, %v81
    %vm422 = vcmp.gt.f32.partialorder %v364, %v82
    %vm423 = vcmp.gt.f32.partialorder %v368, %v81
    %vm424 = vcmp.gt.f32.partialorder %v368, %v82
    %vm425 = vcmp.gt.f32.partialorder %v372, %v81
    %vm426 = vcmp.gt.f32.partialorder %v372, %v82
    %vm427 = vcmp.gt.f32.partialorder %v376, %v81
    %vm428 = vcmp.gt.f32.partialorder %v376, %v82
    %vm429 = vcmp.gt.f32.partialorder %v380, %v81
    %vm430 = vcmp.gt.f32.partialorder %v380, %v82
    %vm431 = vcmp.gt.f32.partialorder %v384, %v81
    %vm432 = vcmp.gt.f32.partialorder %v384, %v82
    %v433 = vsel %vm401, 1, 0
    %v434 = vsel %vm402, 1, 0
    %v435 = vsel %vm403, 1, 0
    %v436 = vsel %vm404, 1, 0
    %v437 = vsel %vm405, 1, 0
    %v438 = vsel %vm406, 1, 0
    %v439 = vsel %vm407, 1, 0
    %v440 = vsel %vm408, 1, 0
    %v441 = vsel %vm409, 1, 0
    %v442 = vsel %vm410, 1, 0
    %v443 = vsel %vm411, 1, 0
    %v444 = vsel %vm412, 1, 0
    %v445 = vsel %vm413, 1, 0
    %v446 = vsel %vm414, 1, 0
    %v447 = vsel %vm415, 1, 0
    %v448 = vsel %vm416, 1, 0
    %v449 = vsel %vm417, 1, 0
    %v450 = vsel %vm418, 1, 0
    %v451 = vsel %vm419, 1, 0
    %v452 = vsel %vm420, 1, 0
    %v453 = vsel %vm421, 1, 0
    %v454 = vsel %vm422, 1, 0
    %v455 = vsel %vm423, 1, 0
    %v456 = vsel %vm424, 1, 0
    %v457 = vsel %vm425, 1, 0
    %v458 = vsel %vm426, 1, 0
    %v459 = vsel %vm427, 1, 0
    %v460 = vsel %vm428, 1, 0
    %v461 = vsel %vm429, 1, 0
    %v462 = vsel %vm430, 1, 0
    %v463 = vsel %vm431, 1, 0
    %v464 = vsel %vm432, 1, 0
    %v465 = vcvt.s32.f32 %v433
    %v466 = vcvt.s32.f32 %v434
    %v467 = vcvt.s32.f32 %v435
    %v468 = vcvt.s32.f32 %v436
    %v469 = vcvt.s32.f32 %v437
    %v470 = vcvt.s32.f32 %v438
    %v471 = vcvt.s32.f32 %v439
    %v472 = vcvt.s32.f32 %v440
    %v473 = vcvt.s32.f32 %v441
    %v474 = vcvt.s32.f32 %v442
    %v475 = vcvt.s32.f32 %v443
    %v476 = vcvt.s32.f32 %v444
    %v477 = vcvt.s32.f32 %v445
    %v478 = vcvt.s32.f32 %v446
    %v479 = vcvt.s32.f32 %v447
    %v480 = vcvt.s32.f32 %v448
    %v481 = vcvt.s32.f32 %v449
    %v482 = vcvt.s32.f32 %v450
    %v483 = vcvt.s32.f32 %v451
    %v484 = vcvt.s32.f32 %v452
    %v485 = vcvt.s32.f32 %v453
    %v486 = vcvt.s32.f32 %v454
    %v487 = vcvt.s32.f32 %v455
    %v488 = vcvt.s32.f32 %v456
    %v489 = vcvt.s32.f32 %v457
    %v490 = vcvt.s32.f32 %v458
    %v491 = vcvt.s32.f32 %v459
    %v492 = vcvt.s32.f32 %v460
    %v493 = vcvt.s32.f32 %v461
    %v494 = vcvt.s32.f32 %v462
    %v495 = vcvt.s32.f32 %v463
    %v496 = vcvt.s32.f32 %v464
    %vm497 = vcmp.ge.f32.partialorder %v324, %v81
    %vm498 = vcmp.ge.f32.partialorder %v324, %v82
    %vm499 = vcmp.ge.f32.partialorder %v328, %v81
    %vm500 = vcmp.ge.f32.partialorder %v328, %v82
    %vm501 = vcmp.ge.f32.partialorder %v332, %v81
    %vm502 = vcmp.ge.f32.partialorder %v332, %v82
    %vm503 = vcmp.ge.f32.partialorder %v336, %v81
    %vm504 = vcmp.ge.f32.partialorder %v336, %v82
    %vm505 = vcmp.ge.f32.partialorder %v340, %v81
    %vm506 = vcmp.ge.f32.partialorder %v340, %v82
    %vm507 = vcmp.ge.f32.partialorder %v344, %v81
    %vm508 = vcmp.ge.f32.partialorder %v344, %v82
    %vm509 = vcmp.ge.f32.partialorder %v348, %v81
    %vm510 = vcmp.ge.f32.partialorder %v348, %v82
    %vm511 = vcmp.ge.f32.partialorder %v352, %v81
    %vm512 = vcmp.ge.f32.partialorder %v352, %v82
    %vm513 = vcmp.ge.f32.partialorder %v356, %v81
    %vm514 = vcmp.ge.f32.partialorder %v356, %v82
    %vm515 = vcmp.ge.f32.partialorder %v360, %v81
    %vm516 = vcmp.ge.f32.partialorder %v360, %v82
    %vm517 = vcmp.ge.f32.partialorder %v364, %v81
    %vm518 = vcmp.ge.f32.partialorder %v364, %v82
    %vm519 = vcmp.ge.f32.partialorder %v368, %v81
    %vm520 = vcmp.ge.f32.partialorder %v368, %v82
    %vm521 = vcmp.ge.f32.partialorder %v372, %v81
    %vm522 = vcmp.ge.f32.partialorder %v372, %v82
    %vm523 = vcmp.ge.f32.partialorder %v376, %v81
    %vm524 = vcmp.ge.f32.partialorder %v376, %v82
    %vm525 = vcmp.ge.f32.partialorder %v380, %v81
    %vm526 = vcmp.ge.f32.partialorder %v380, %v82
    %vm527 = vcmp.ge.f32.partialorder %v384, %v81
    %vm528 = vcmp.ge.f32.partialorder %v384, %v82
    %v529 = vsel %vm497, 1, 0
    %v530 = vsel %vm498, 1, 0
    %v531 = vsel %vm499, 1, 0
    %v532 = vsel %vm500, 1, 0
    %v533 = vsel %vm501, 1, 0
    %v534 = vsel %vm502, 1, 0
    %v535 = vsel %vm503, 1, 0
    %v536 = vsel %vm504, 1, 0
    %v537 = vsel %vm505, 1, 0
    %v538 = vsel %vm506, 1, 0
    %v539 = vsel %vm507, 1, 0
    %v540 = vsel %vm508, 1, 0
    %v541 = vsel %vm509, 1, 0
    %v542 = vsel %vm510, 1, 0
    %v543 = vsel %vm511, 1, 0
    %v544 = vsel %vm512, 1, 0
    %v545 = vsel %vm513, 1, 0
    %v546 = vsel %vm514, 1, 0
    %v547 = vsel %vm515, 1, 0
    %v548 = vsel %vm516, 1, 0
    %v549 = vsel %vm517, 1, 0
    %v550 = vsel %vm518, 1, 0
    %v551 = vsel %vm519, 1, 0
    %v552 = vsel %vm520, 1, 0
    %v553 = vsel %vm521, 1, 0
    %v554 = vsel %vm522, 1, 0
    %v555 = vsel %vm523, 1, 0
    %v556 = vsel %vm524, 1, 0
    %v557 = vsel %vm525, 1, 0
    %v558 = vsel %vm526, 1, 0
    %v559 = vsel %vm527, 1, 0
    %v560 = vsel %vm528, 1, 0
    %v561 = vcvt.s32.f32 %v529
    %v562 = vcvt.s32.f32 %v530
    %v563 = vcvt.s32.f32 %v531
    %v564 = vcvt.s32.f32 %v532
    %v565 = vcvt.s32.f32 %v533
    %v566 = vcvt.s32.f32 %v534
    %v567 = vcvt.s32.f32 %v535
    %v568 = vcvt.s32.f32 %v536
    %v569 = vcvt.s32.f32 %v537
    %v570 = vcvt.s32.f32 %v538
    %v571 = vcvt.s32.f32 %v539
    %v572 = vcvt.s32.f32 %v540
    %v573 = vcvt.s32.f32 %v541
    %v574 = vcvt.s32.f32 %v542
    %v575 = vcvt.s32.f32 %v543
    %v576 = vcvt.s32.f32 %v544
    %v577 = vcvt.s32.f32 %v545
    %v578 = vcvt.s32.f32 %v546
    %v579 = vcvt.s32.f32 %v547
    %v580 = vcvt.s32.f32 %v548
    %v581 = vcvt.s32.f32 %v549
    %v582 = vcvt.s32.f32 %v550
    %v583 = vcvt.s32.f32 %v551
    %v584 = vcvt.s32.f32 %v552
    %v585 = vcvt.s32.f32 %v553
    %v586 = vcvt.s32.f32 %v554
    %v587 = vcvt.s32.f32 %v555
    %v588 = vcvt.s32.f32 %v556
    %v589 = vcvt.s32.f32 %v557
    %v590 = vcvt.s32.f32 %v558
    %v591 = vcvt.s32.f32 %v559
    %v592 = vcvt.s32.f32 %v560
    %v593 = vadd.f32 %v465, %v561
    %v594 = vadd.f32 %v466, %v562
    %v595 = vadd.f32 %v467, %v563
    %v596 = vadd.f32 %v468, %v564
    %v597 = vadd.f32 %v469, %v565
    %v598 = vadd.f32 %v470, %v566
    %v599 = vadd.f32 %v471, %v567
    %v600 = vadd.f32 %v472, %v568
    %v601 = vadd.f32 %v473, %v569
    %v602 = vadd.f32 %v474, %v570
    %v603 = vadd.f32 %v475, %v571
    %v604 = vadd.f32 %v476, %v572
    %v605 = vadd.f32 %v477, %v573
    %v606 = vadd.f32 %v478, %v574
    %v607 = vadd.f32 %v479, %v575
    %v608 = vadd.f32 %v480, %v576
    %v609 = vadd.f32 %v481, %v577
    %v610 = vadd.f32 %v482, %v578
    %v611 = vadd.f32 %v483, %v579
    %v612 = vadd.f32 %v484, %v580
    %v613 = vadd.f32 %v485, %v581
    %v614 = vadd.f32 %v486, %v582
    %v615 = vadd.f32 %v487, %v583
    %v616 = vadd.f32 %v488, %v584
    %v617 = vadd.f32 %v489, %v585
    %v618 = vadd.f32 %v490, %v586
    %v619 = vadd.f32 %v491, %v587
    %v620 = vadd.f32 %v492, %v588
    %v621 = vadd.f32 %v493, %v589
    %v622 = vadd.f32 %v494, %v590
    %v623 = vadd.f32 %v495, %v591
    %v624 = vadd.f32 %v496, %v592
    %v625 = vlaneseq
    %v626 = vshrl.u32 %v625, 7
    %v627 = vsub.s32 0, %v626
    %v628 = vrot.slane %v246, %v627
    %v629 = vlaneseq
    %v630 = vshrl.u32 %v629, 7
    %v631 = vsub.s32 0, %v630
    %v632 = vrot.slane %v260, %v631
    %v633 = vlaneseq
    %v634 = vshrl.u32 %v633, 7
    %v635 = vsub.s32 0, %v634
    %v636 = vrot.slane %v268, %v635
    %v637 = vlaneseq
    %v638 = vshrl.u32 %v637, 7
    %v639 = vsub.s32 0, %v638
    %v640 = vrot.slane %v270, %v639
    %v641 = vlaneseq
    %v642 = vshrl.u32 %v641, 7
    %v643 = vsub.s32 0, %v642
    %v644 = vrot.slane %v253, %v643
    %v645 = vlaneseq
    %v646 = vshrl.u32 %v645, 7
    %v647 = vsub.s32 0, %v646
    %v648 = vrot.slane %v267, %v647
    %v649 = vlaneseq
    %v650 = vshrl.u32 %v649, 7
    %v651 = vsub.s32 0, %v650
    %v652 = vrot.slane %v269, %v651
    %v653 = vlaneseq
    %v654 = vshrl.u32 %v653, 7
    %v655 = vsub.s32 0, %v654
    %v656 = vrot.slane %v271, %v655
    %v657 = vlaneseq
    %v658 = vshrl.u32 %v657, 7
    %v659 = vsub.s32 0, %v658
    %v660 = vrot.slane %v295, %v659
    %v661 = vlaneseq
    %v662 = vshrl.u32 %v661, 7
    %v663 = vsub.s32 0, %v662
    %v664 = vrot.slane %v309, %v663
    %v665 = vlaneseq
    %v666 = vshrl.u32 %v665, 7
    %v667 = vsub.s32 0, %v666
    %v668 = vrot.slane %v317, %v667
    %v669 = vlaneseq
    %v670 = vshrl.u32 %v669, 7
    %v671 = vsub.s32 0, %v670
    %v672 = vrot.slane %v319, %v671
    %v673 = vlaneseq
    %v674 = vshrl.u32 %v673, 7
    %v675 = vsub.s32 0, %v674
    %v676 = vrot.slane %v302, %v675
    %v677 = vlaneseq
    %v678 = vshrl.u32 %v677, 7
    %v679 = vsub.s32 0, %v678
    %v680 = vrot.slane %v316, %v679
    %v681 = vlaneseq
    %v682 = vshrl.u32 %v681, 7
    %v683 = vsub.s32 0, %v682
    %v684 = vrot.slane %v318, %v683
    %v685 = vlaneseq
    %v686 = vshrl.u32 %v685, 7
    %v687 = vsub.s32 0, %v686
    %v688 = vrot.slane %v320, %v687
    %v705 = vmul.f32 %v628, %v593
    %v706 = vmul.f32 %v628, %v594
    %v707 = vmul.f32 %v632, %v595
    %v708 = vmul.f32 %v632, %v596
    %v709 = vmul.f32 %v636, %v597
    %v710 = vmul.f32 %v636, %v598
    %v711 = vmul.f32 %v640, %v599
    %v712 = vmul.f32 %v640, %v600
    %v713 = vmul.f32 %v644, %v601
    %v714 = vmul.f32 %v644, %v602
    %v715 = vmul.f32 %v648, %v603
    %v716 = vmul.f32 %v648, %v604
    %v717 = vmul.f32 %v652, %v605
    %v718 = vmul.f32 %v652, %v606
    %v719 = vmul.f32 %v656, %v607
    %v720 = vmul.f32 %v656, %v608
    %v721 = vmul.f32 %v660, %v609
    %v722 = vmul.f32 %v660, %v610
    %v723 = vmul.f32 %v664, %v611
    %v724 = vmul.f32 %v664, %v612
    %v725 = vmul.f32 %v668, %v613
    %v726 = vmul.f32 %v668, %v614
    %v727 = vmul.f32 %v672, %v615
    %v728 = vmul.f32 %v672, %v616
    %v729 = vmul.f32 %v676, %v617
    %v730 = vmul.f32 %v676, %v618
    %v731 = vmul.f32 %v680, %v619
    %v732 = vmul.f32 %v680, %v620
    %v733 = vmul.f32 %v684, %v621
    %v734 = vmul.f32 %v684, %v622
    %v735 = vmul.f32 %v688, %v623
    %v736 = vmul.f32 %v688, %v624
    %v737 = vadd.f32 %v705, %v707
    %v738 = vadd.f32 %v737, %v709
    %v739 = vadd.f32 %v738, %v711
    %v740 = vadd.f32 %v739, %v713
    %v741 = vadd.f32 %v740, %v715
    %v742 = vadd.f32 %v741, %v717
    %v743 = vadd.f32 %v742, %v719
    %v744 = vadd.f32 %v743, %v721
    %v745 = vadd.f32 %v744, %v723
    %v746 = vadd.f32 %v745, %v725
    %v747 = vadd.f32 %v746, %v727
    %v748 = vadd.f32 %v747, %v729
    %v749 = vadd.f32 %v748, %v731
    %v750 = vadd.f32 %v749, %v733
    %v751 = vadd.f32 %v750, %v735
    %v752 = vadd.f32 %v706, %v708
    %v753 = vadd.f32 %v752, %v710
    %v754 = vadd.f32 %v753, %v712
    %v755 = vadd.f32 %v754, %v714
    %v756 = vadd.f32 %v755, %v716
    %v757 = vadd.f32 %v756, %v718
    %v758 = vadd.f32 %v757, %v720
    %v759 = vadd.f32 %v758, %v722
    %v760 = vadd.f32 %v759, %v724
    %v761 = vadd.f32 %v760, %v726
    %v762 = vadd.f32 %v761, %v728
    %v763 = vadd.f32 %v762, %v730
    %v764 = vadd.f32 %v763, %v732
    %v765 = vadd.f32 %v764, %v734
    %v766 = vadd.f32 %v765, %v736
    %v767 = vld [vmem:[#allocation3 + $0x3] sm:$0x1]
    %v768 = vmul.f32 %v85, %v751
    %v769 = vmul.f32 %v86, %v766
    %v770 = vadd.f32 %v768, %v769
    %v771 = vrot.slane %v770, 4
    %v772 = vadd.f32 %v770, %v771
    %v773 = vrot.slane %v772, 2
    %v774 = vadd.f32 %v772, %v773
    %v775 = vrot.slane %v774, 1
    %v776 = vadd.f32 %v774, %v775
    %v777 = vadd.f32 %v767, %v776
    %778 = vst [vmem:[#allocation3 + $0x3] sm:$0x1] %v777
    %v779 = vld [vmem:[#allocation3] sm:$0x1]
    %v780 = vld [vmem:[#allocation3 + $0x1] sm:$0x1]
    %v781 = vld [vmem:[#allocation3 + $0x2] sm:$0x1]
    %v782 = vld [vmem:[#allocation3 + $0x3] sm:$0x1]
    %v783 = vmul.f32 %v782, 0.5
    %s784 = scvt.s32.f32 %s58
    %v785 = vsub.f32 %v780, %v779
    %v786 = vsub.f32 %v781, %v779
    %v787 = vstv %s784
    %v788 = vsub.f32 %v787, %v780
    %v789 = vsub.f32 %v788, %v781
    %v790 = vadd.f32 %v789, %v779
    %v791 = vadd.f32 %v779, %v790
    %p792 = scmp.gt.s32.totalorder %s58, 0
    %s793 = scalar_select %p792, %s784, 1.0
    %v794 = vstv %s793
    %v795 = vrcp.pop %v794
    %v796 = vmul.f32 %v791, %v795
    %s797 = scalar_select %p792, 1, 0
    %v798 = vstv %s797
    %vm799 = vcmp.eq.s32.totalorder %v798, 1
    %v800 = vsel %vm799, %v796, 0.0
    %v801 = vadd.f32 %v779, %v785
    %vm802 = vcmp.gt.f32.partialorder %v801, 0.0
    %v803 = vsel %vm802, %v801, 1.0
    %v804 = vrcp.pop %v803
    %v805 = vmul.f32 %v779, %v804
    %v806 = vsel %vm802, %v805, 0.0
    %vm807 = vcmp.gt.f32.partialorder %v781, 0.0
    %v808 = vsel %vm807, %v781, 1.0
    %v809 = vrcp.pop %v808
    %v810 = vmul.f32 %v779, %v809
    %v811 = vsel %vm807, %v810, 0.0
    %v812 = vmul.f32 %v779, 2.0
    %v813 = vadd.f32 %v812, %v785
    %v814 = vadd.f32 %v813, %v786
    %vm815 = vcmp.gt.f32.partialorder %v814, 0.0
    %v816 = vsel %vm815, %v814, 1.0
    %v817 = vrcp.pop %v816
    %v818 = vmul.f32 %v812, %v817
    %v819 = vsel %vm815, %v818, 0.0
    %v820 = vsub.f32 %v787, %v781
    %v821 = vmul.f32 %v781, %v820
    %vm822 = vcmp.gt.f32.partialorder %v821, 0.0
    %v823 = vsel %vm822, %v821, 1.0
    %v824 = vrcp.pop %v823
    %v825 = vmul.f32 %v783, %v824
    %v826 = vsel %vm822, %v825, 0.0
    %v827 = vsel %vm822, 1, 0
    %v828 = vcvt.s32.f32 %v827
    %829 = vst [vmem:[#allocation12] sm:$0x1] %v800
    %830 = vst [vmem:[#allocation12 + $0x1] sm:$0x1] %v806
    %831 = vst [vmem:[#allocation12 + $0x2] sm:$0x1] %v811
    %832 = vst [vmem:[#allocation12 + $0x3] sm:$0x1] %v819
    %833 = vst [vmem:[#allocation12 + $0x4] sm:$0x1] %v826
    %834 = vst [vmem:[#allocation12 + $0x5] sm:$0x1] %v828
    %835 = vst [vmem:[#allocation12 + $0x6] sm:$0x3] 0.0
    // Predicated region
    $region26: #{tpu_custom_call.1} parent=1 // pred_check
      _
    $region27: #{tpu_custom_call.1} parent=1 // pred_check_branch
      %837 = sbr.rel (0) target = $region29
    $region28: #{tpu_custom_call.1} parent=1 // pred_region
      %s839 = ssub.s32 128, 128
      %840 = vsyncadd [#allocation8], %s839
      %s842 = sshll.u32 [#allocation12], 4
      %s843 = int_to_ptr.vmem [resolvable:$true] %s842
      %845 = dma.vmem_to_hbm [thread:$0]  %s843, 128, %s4, [#allocation8]
    $region29: #{tpu_custom_call.1} parent=1 // pred_fallthru
      _
    // Predicated region
    $region30: #{tpu_custom_call.1} parent=1 // pred_check
      _
    $region31: #{tpu_custom_call.1} parent=1 // pred_check_branch
      %847 = sbr.rel (0) target = $region33
    $region32: #{tpu_custom_call.1} parent=1 // pred_region
      %848 = dma.done [#allocation8], 128
    $region33: #{tpu_custom_call.1} parent=1 // pred_fallthru
      _
    %849 = vsyncpa [#allocation7], 1
    %850 = vsyncpa [#allocation10], 1
    %851 = vsyncpa [#allocation8], 1

</llo_original>
